<compile_context>
chip_gen: v7x
topology: tpu7x:2x2x1
jax: 0.10.0
libtpu: 0.0.40
codegen_flags: <defaults>
</compile_context>

<pallas_src>
import numpy as np

import jax
import jax.numpy as jnp
from jax.experimental import pallas as pl
from jax.experimental.pallas import tpu as pltpu

BN_EPS = 1e-5
_LANE = 128
_TARGET_LANES = 4096                      # output lanes per grid step to aim for
_IO_VMEM_BUDGET = 10 * 1024 * 1024        # double-buffered in+out block budget (bytes)


def _cdiv(a, b):
    return -(-a // b)


def _round_up(a, b):
    return _cdiv(a, b) * b


def _pointwise_vpu(w, v, cin):
    """(Cout, Cin) f32 x (Cin, L) f32 -> (Cout, L) f32 via VPU outer-product FMAs."""
    acc = w[:, 0:1] * v[0:1, :]
    for ci in range(1, cin):
        acc = acc + w[:, ci:ci + 1] * v[ci:ci + 1, :]
    return acc


# ------------------------------- Pallas kernel -------------------------------- #
def _make_kernel(*, g, pq, cin, lout, conv_taps, pool_taps, center_tap,
                 use_pool, use_pad, use_mxu):
    def kernel(*refs):
        if use_pad:
            win_ref, wdw_ref, wpw_ref, wcp_ref, out_ref = refs
        else:
            win_ref, wdw_ref, wpw_ref, out_ref = refs
            wcp_ref = None

        wdw = wdw_ref[...]                       # (Cin, 9)    f32, BN folded
        wpw = wpw_ref[...]                       # (Cout, Cin) bf16 (MXU) / f32 (VPU)
        wcp = wcp_ref[...] if use_pad else None

        for gi in range(g):                      # G whole images per grid step
            # bf16 phase planes of image gi; taps are constant-offset lane slices.
            planes = [win_ref[gi * pq + k] for k in range(pq)]     # (Cin, Lplane) bf16

            cache = {}

            def tap(k, off, _planes=planes, _cache=cache):
                if (k, off) not in _cache:
                    _cache[(k, off)] = _planes[k][:, off:off + lout]   # bf16 (Cin, lout)
                return _cache[(k, off)]

            # --- depthwise 3x3 (BN folded) + ReLU: 9-tap f32 MAC on the VPU ---
            k0, o0 = conv_taps[0]
            acc = tap(k0, o0).astype(jnp.float32) * wdw[:, 0:1]
            for t in range(1, 9):
                kk, off = conv_taps[t]
                acc = acc + tap(kk, off).astype(jnp.float32) * wdw[:, t:t + 1]
            dw = jnp.maximum(acc, 0.0)           # (Cin, lout) f32

            # --- pointwise 1x1 (BN folded) + ReLU: MXU (bf16, f32 acc) for cin>=8 ---
            if use_mxu:
                y = jnp.dot(wpw, dw.astype(jnp.bfloat16),
                            preferred_element_type=jnp.float32)
            else:
                y = _pointwise_vpu(wpw, dw, cin)
            y = jnp.maximum(y, 0.0)              # (Cout, lout) f32

            # --- shortcut: 2x2 maxpool (stride 2) or identity, then optional 1x1 ---
            if use_pool:
                sc = tap(*pool_taps[0]).astype(jnp.float32)
                for pt in pool_taps[1:]:
                    sc = jnp.maximum(sc, tap(*pt).astype(jnp.float32))
            else:
                sc = tap(*center_tap).astype(jnp.float32)   # exactly x at output positions
            if use_pad:
                if use_mxu:
                    s = jnp.dot(wcp, sc.astype(jnp.bfloat16),
                                preferred_element_type=jnp.float32)
                else:
                    s = _pointwise_vpu(wcp, sc, cin)
                s = jnp.maximum(s, 0.0)
            else:
                s = sc

            # residual add + final ReLU; lane-dense (Cout, lout) store
            out_ref[gi] = jnp.maximum(y + s, 0.0).astype(out_ref.dtype)

    return kernel


# --------------------------------- wrapper ------------------------------------ #
def blaze_block_lite_pallas(x_nchw, params, stride):
    assert stride in (1, 2)
    N, Cin, H, W = x_nchw.shape
    Cout = params["w_pw"].shape[0]
    use_pool = stride != 1
    use_pad = Cin != Cout
    use_mxu = Cin >= 8
    Ho, Wo = _cdiv(H, stride), _cdiv(W, stride)

    xb = x_nchw.astype(jnp.bfloat16)             # bf16 transport; f32 compute in-kernel
    xp = jnp.pad(xb, ((0, 0), (0, 0), (1, 1), (1, 1)))       # conv zero-pad

    if stride == 2:
        # even/odd phase decomposition -> strided conv & ceil-mode pool become
        # constant lane offsets inside per-image phase planes.
        He, We = _round_up(H + 2, 2), _round_up(W + 2, 2)
        xp = jnp.pad(xp, ((0, 0), (0, 0), (0, He - (H + 2)), (0, We - (W + 2))))
        Hh, Wq = He // 2, We // 2
        pq = 4
        planes = xp.reshape(N, Cin, Hh, 2, Wq, 2).transpose(0, 3, 5, 1, 2, 4)
        planes = planes.reshape(N, pq, Cin, Hh * Wq)
        conv_taps = [((di % 2) * 2 + (dj % 2), (di // 2) * Wq + (dj // 2))
                     for di in range(3) for dj in range(3)]
        pool_taps = [((((1 + pi) % 2) * 2 + ((1 + pj) % 2)),
                      ((1 + pi) // 2) * Wq + ((1 + pj) // 2))
                     for pi in range(2) for pj in range(2)]
        center_tap = None
        halo = Wq + 1
        cols_p = Wq
        Ldata = Hh * Wq
    else:
        He, We = H + 2, W + 2
        pq = 1
        planes = xp.reshape(N, 1, Cin, He * We)               # no transpose needed
        conv_taps = [(0, di * We + dj) for di in range(3) for dj in range(3)]
        pool_taps = None
        center_tap = (0, We + 1)
        halo = 2 * We + 2
        cols_p = We
        Ldata = He * We

    Lout = Ho * cols_p                           # per-image output pitch (Ho rows x pitch)
    Lout_p = _round_up(Lout, _LANE)              # lane-dense output stores
    Lplane = _round_up(Lout_p + halo, _LANE)     # input plane pitch (taps never OOB)
    planes = jnp.pad(planes, ((0, 0), (0, 0), (0, 0), (0, Lplane - Ldata)))

    # ---- group G whole images per grid step (amortize ~0.35us/step overhead) ----
    G = max(1, min(N, _TARGET_LANES // Lout_p))
    cin_p, cout_p = _round_up(Cin, 8), _round_up(Cout, 8)

    def footprint(g):                            # double-buffered in + out blocks
        return 2 * (g * pq * cin_p * Lplane * 2 + g * cout_p * Lout_p * 4)

    while G > 1 and footprint(G) > _IO_VMEM_BUDGET:
        G -= 1
    nt = _cdiv(N, G)
    # v7x megacore: split into >=2 steps only if each step still has >=2048 lanes.
    if nt == 1 and N >= 2 and G * Lout_p >= 2 * 2048:
        G = _cdiv(N, 2)
        nt = _cdiv(N, G)
    N_pad = nt * G
    if N_pad > N:
        planes = jnp.pad(planes, ((0, N_pad - N), (0, 0), (0, 0), (0, 0)))
    planes = planes.reshape(N_pad * pq, Cin, Lplane)

    # ---- weights with inference BatchNorm folded in (gamma=1, beta=0, mean=0, var=1) ----
    bn_s = np.float32(1.0 / np.sqrt(1.0 + BN_EPS))
    pw_dtype = jnp.bfloat16 if use_mxu else jnp.float32
    w_dw_mat = (params["w_dw"][:, 0].reshape(Cin, 9) * bn_s).astype(jnp.float32)
    w_pw_mat = (params["w_pw"][:, :, 0, 0] * bn_s).astype(pw_dtype)

    operands = [planes, w_dw_mat, w_pw_mat]
    in_specs = [
        pl.BlockSpec((G * pq, Cin, Lplane), lambda t: (t, 0, 0)),
        pl.BlockSpec((Cin, 9), lambda t: (0, 0)),
        pl.BlockSpec((Cout, Cin), lambda t: (0, 0)),
    ]
    if use_pad:
        w_cp_mat = (params["w_cp"][:, :, 0, 0] * bn_s).astype(pw_dtype)
        operands.append(w_cp_mat)
        in_specs.append(pl.BlockSpec((Cout, Cin), lambda t: (0, 0)))

    kernel = _make_kernel(g=G, pq=pq, cin=Cin, lout=Lout_p,
                          conv_taps=conv_taps, pool_taps=pool_taps,
                          center_tap=center_tap, use_pool=use_pool,
                          use_pad=use_pad, use_mxu=use_mxu)

    out = pl.pallas_call(
        kernel,
        out_shape=jax.ShapeDtypeStruct((N_pad, Cout, Lout_p), jnp.float32),
        grid=(nt,),
        in_specs=in_specs,
        out_specs=pl.BlockSpec((G, Cout, Lout_p), lambda t: (t, 0, 0)),
        compiler_params=pltpu.CompilerParams(
            dimension_semantics=("parallel",),
            vmem_limit_bytes=32 * 1024 * 1024),
    )(*operands)

    # drop batch/lane padding and edge garbage; layout is already NCHW (no transpose)
    out = out[:N, :, :Lout].reshape(N, Cout, Ho, cols_p)[:, :, :, :Wo]
    return out


blaze_block_lite = jax.jit(blaze_block_lite_pallas, static_argnums=2)


# ----------------------- deterministic parameter init ------------------------- #
def init_params(key, cin, cout):
    k1, k2, k3 = jax.random.split(key, 3)

    def kaiming(k, shape):
        fan_in = shape[1] * shape[2] * shape[3]
        return jax.random.normal(k, shape, jnp.float32) * np.sqrt(2.0 / fan_in)

    return {
        "w_dw": kaiming(k1, (cin, 1, 3, 3)),       # depthwise (groups=cin)
        "w_pw": kaiming(k2, (cout, cin, 1, 1)),    # pointwise
        "w_cp": kaiming(k3, (cout, cin, 1, 1)),    # channel_pad (used if cin != cout)
    }


# ---------------------------- pure-JAX reference ------------------------------- #
def reference(x, params, stride):
    bn_s = 1.0 / np.sqrt(1.0 + BN_EPS)

    def convbnrelu(z, w, groups, s, pad):
        y = jax.lax.conv_general_dilated(
            z, w, (s, s), [(pad, pad), (pad, pad)],
            dimension_numbers=("NCHW", "OIHW", "NCHW"),
            feature_group_count=groups,
            precision=jax.lax.Precision.HIGHEST)
        return jnp.maximum(y * bn_s, 0.0)

    cin = x.shape[1]
    cout = params["w_pw"].shape[0]
    z = convbnrelu(x, params["w_dw"], cin, stride, 1)
    z = convbnrelu(z, params["w_pw"], 1, 1, 0)
    y = x
    if stride != 1:
        N, C, H, W = x.shape
        Hp, Wp = -(-H // stride), -(-W // stride)
        yp = jnp.pad(x, ((0, 0), (0, 0), (0, Hp * stride - H), (0, Wp * stride - W)),
                     constant_values=-jnp.inf)
        y = jax.lax.reduce_window(yp, -jnp.inf, jax.lax.max,
                                  (1, 1, stride, stride), (1, 1, stride, stride),
                                  "VALID")
    if cin != cout:
        y = convbnrelu(y, params["w_cp"], 1, 1, 0)
    return jnp.maximum(z + y, 0.0)


# ------------------------------------ main ------------------------------------- #
if __name__ == "__main__":
    key = jax.random.PRNGKey(0)

    configs = [
        (2, 4, 8, 16, 16, 2),     # stride 2: maxpool + channel_pad shortcut, VPU 1x1 (cin<8)
        (2, 4, 8, 16, 16, 1),     # stride 1: channel_pad shortcut, VPU 1x1
        (2, 8, 8, 16, 16, 1),     # stride 1: identity shortcut, MXU 1x1
        (2, 16, 24, 16, 16, 2),   # stride 2: maxpool + channel_pad shortcut, MXU 1x1
    ]
    for i, (N, Cin, Cout, H, W, stride) in enumerate(configs):
        kx, kp = jax.random.split(jax.random.fold_in(key, i))
        x = jax.random.normal(kx, (N, Cin, H, W), jnp.float32)
        params = init_params(kp, Cin, Cout)

        out = jax.block_until_ready(blaze_block_lite(x, params, stride))

        # reference consumes the same bf16-rounded input the kernel transports
        x_q = x.astype(jnp.bfloat16).astype(jnp.float32)
        ref = reference(x_q, params, stride)
        # bf16 MXU 1x1 path (cin>=8) needs a looser tolerance than the f32 VPU path
        tol_r, tol_a = ((1e-3, 1e-3) if Cin < 8 else (6e-2, 8e-2))
        np.testing.assert_allclose(np.asarray(out), np.asarray(ref),
                                   rtol=tol_r, atol=tol_a)

    print("KERNEL_OK")
</pallas_src>

<mosaic_0001>
module attributes {stable_mosaic.version = 11 : i64} {
  func.func @kernel(%arg0: i32, %arg1: memref<8x4x256xbf16, #tpu.memory_space<vmem>>, %arg2: memref<4x9xf32, #tpu.memory_space<vmem>>, %arg3: memref<8x4xf32, #tpu.memory_space<vmem>>, %arg4: memref<8x4xf32, #tpu.memory_space<vmem>>, %arg5: memref<2x8x128xf32, #tpu.memory_space<vmem>>) attributes {dimension_semantics = [#tpu.dimension_semantics<parallel>], iteration_bounds = array<i64: 1>, scalar_prefetch = 0 : i64, scratch_operands = 0 : i64, tpu.core_type = #tpu.core_type<tc>, window_params = [{transform_indices = @transform_0, window_bounds = array<i64: 8, 4, 256>}, {pipeline_mode = #tpu.pipeline_mode<synchronous>, transform_indices = @transform_1, window_bounds = array<i64: 4, 9>}, {pipeline_mode = #tpu.pipeline_mode<synchronous>, transform_indices = @transform_2, window_bounds = array<i64: 8, 4>}, {pipeline_mode = #tpu.pipeline_mode<synchronous>, transform_indices = @transform_3, window_bounds = array<i64: 8, 4>}, {transform_indices = @transform_4, window_bounds = array<i64: 2, 8, 128>}]} {
    %c0 = arith.constant 0 : index
    %c0_0 = arith.constant 0 : index
    %0 = vector.load %arg2[%c0, %c0_0] : memref<4x9xf32, #tpu.memory_space<vmem>>, vector<4x9xf32>
    %c0_1 = arith.constant 0 : index
    %c0_2 = arith.constant 0 : index
    %1 = vector.load %arg3[%c0_1, %c0_2] : memref<8x4xf32, #tpu.memory_space<vmem>>, vector<8x4xf32>
    %c0_3 = arith.constant 0 : index
    %c0_4 = arith.constant 0 : index
    %2 = vector.load %arg4[%c0_3, %c0_4] : memref<8x4xf32, #tpu.memory_space<vmem>>, vector<8x4xf32>
    %c0_5 = arith.constant 0 : index
    %c0_6 = arith.constant 0 : index
    %c0_7 = arith.constant 0 : index
    %3 = vector.load %arg1[%c0_5, %c0_6, %c0_7] : memref<8x4x256xbf16, #tpu.memory_space<vmem>>, vector<1x4x256xbf16>
    %4 = vector.shape_cast %3 : vector<1x4x256xbf16> to vector<4x256xbf16>
    %c1 = arith.constant 1 : index
    %c0_8 = arith.constant 0 : index
    %c0_9 = arith.constant 0 : index
    %5 = vector.load %arg1[%c1, %c0_8, %c0_9] : memref<8x4x256xbf16, #tpu.memory_space<vmem>>, vector<1x4x256xbf16>
    %6 = vector.shape_cast %5 : vector<1x4x256xbf16> to vector<4x256xbf16>
    %c2 = arith.constant 2 : index
    %c0_10 = arith.constant 0 : index
    %c0_11 = arith.constant 0 : index
    %7 = vector.load %arg1[%c2, %c0_10, %c0_11] : memref<8x4x256xbf16, #tpu.memory_space<vmem>>, vector<1x4x256xbf16>
    %8 = vector.shape_cast %7 : vector<1x4x256xbf16> to vector<4x256xbf16>
    %c3 = arith.constant 3 : index
    %c0_12 = arith.constant 0 : index
    %c0_13 = arith.constant 0 : index
    %9 = vector.load %arg1[%c3, %c0_12, %c0_13] : memref<8x4x256xbf16, #tpu.memory_space<vmem>>, vector<1x4x256xbf16>
    %10 = vector.shape_cast %9 : vector<1x4x256xbf16> to vector<4x256xbf16>
    %11 = vector.extract_strided_slice %4 {offsets = [0, 0], sizes = [4, 128], strides = [1, 1]} : vector<4x256xbf16> to vector<4x128xbf16>
    %12 = arith.extf %11 : vector<4x128xbf16> to vector<4x128xf32>
    %13 = vector.extract_strided_slice %0 {offsets = [0, 0], sizes = [4, 1], strides = [1, 1]} : vector<4x9xf32> to vector<4x1xf32>
    %14 = vector.broadcast %13 : vector<4x1xf32> to vector<4x128xf32>
    %15 = arith.mulf %12, %14 : vector<4x128xf32>
    %16 = vector.extract_strided_slice %6 {offsets = [0, 0], sizes = [4, 128], strides = [1, 1]} : vector<4x256xbf16> to vector<4x128xbf16>
    %17 = arith.extf %16 : vector<4x128xbf16> to vector<4x128xf32>
    %18 = vector.extract_strided_slice %0 {offsets = [0, 1], sizes = [4, 1], strides = [1, 1]} : vector<4x9xf32> to vector<4x1xf32>
    %19 = vector.broadcast %18 : vector<4x1xf32> to vector<4x128xf32>
    %20 = arith.mulf %17, %19 : vector<4x128xf32>
    %21 = arith.addf %15, %20 : vector<4x128xf32>
    %22 = vector.extract_strided_slice %4 {offsets = [0, 1], sizes = [4, 128], strides = [1, 1]} : vector<4x256xbf16> to vector<4x128xbf16>
    %23 = arith.extf %22 : vector<4x128xbf16> to vector<4x128xf32>
    %24 = vector.extract_strided_slice %0 {offsets = [0, 2], sizes = [4, 1], strides = [1, 1]} : vector<4x9xf32> to vector<4x1xf32>
    %25 = vector.broadcast %24 : vector<4x1xf32> to vector<4x128xf32>
    %26 = arith.mulf %23, %25 : vector<4x128xf32>
    %27 = arith.addf %21, %26 : vector<4x128xf32>
    %28 = vector.extract_strided_slice %8 {offsets = [0, 0], sizes = [4, 128], strides = [1, 1]} : vector<4x256xbf16> to vector<4x128xbf16>
    %29 = arith.extf %28 : vector<4x128xbf16> to vector<4x128xf32>
    %30 = vector.extract_strided_slice %0 {offsets = [0, 3], sizes = [4, 1], strides = [1, 1]} : vector<4x9xf32> to vector<4x1xf32>
    %31 = vector.broadcast %30 : vector<4x1xf32> to vector<4x128xf32>
    %32 = arith.mulf %29, %31 : vector<4x128xf32>
    %33 = arith.addf %27, %32 : vector<4x128xf32>
    %34 = vector.extract_strided_slice %10 {offsets = [0, 0], sizes = [4, 128], strides = [1, 1]} : vector<4x256xbf16> to vector<4x128xbf16>
    %35 = arith.extf %34 : vector<4x128xbf16> to vector<4x128xf32>
    %36 = vector.extract_strided_slice %0 {offsets = [0, 4], sizes = [4, 1], strides = [1, 1]} : vector<4x9xf32> to vector<4x1xf32>
    %37 = vector.broadcast %36 : vector<4x1xf32> to vector<4x128xf32>
    %38 = arith.mulf %35, %37 : vector<4x128xf32>
    %39 = arith.addf %33, %38 : vector<4x128xf32>
    %40 = vector.extract_strided_slice %8 {offsets = [0, 1], sizes = [4, 128], strides = [1, 1]} : vector<4x256xbf16> to vector<4x128xbf16>
    %41 = arith.extf %40 : vector<4x128xbf16> to vector<4x128xf32>
    %42 = vector.extract_strided_slice %0 {offsets = [0, 5], sizes = [4, 1], strides = [1, 1]} : vector<4x9xf32> to vector<4x1xf32>
    %43 = vector.broadcast %42 : vector<4x1xf32> to vector<4x128xf32>
    %44 = arith.mulf %41, %43 : vector<4x128xf32>
    %45 = arith.addf %39, %44 : vector<4x128xf32>
    %46 = vector.extract_strided_slice %4 {offsets = [0, 9], sizes = [4, 128], strides = [1, 1]} : vector<4x256xbf16> to vector<4x128xbf16>
    %47 = arith.extf %46 : vector<4x128xbf16> to vector<4x128xf32>
    %48 = vector.extract_strided_slice %0 {offsets = [0, 6], sizes = [4, 1], strides = [1, 1]} : vector<4x9xf32> to vector<4x1xf32>
    %49 = vector.broadcast %48 : vector<4x1xf32> to vector<4x128xf32>
    %50 = arith.mulf %47, %49 : vector<4x128xf32>
    %51 = arith.addf %45, %50 : vector<4x128xf32>
    %52 = vector.extract_strided_slice %6 {offsets = [0, 9], sizes = [4, 128], strides = [1, 1]} : vector<4x256xbf16> to vector<4x128xbf16>
    %53 = arith.extf %52 : vector<4x128xbf16> to vector<4x128xf32>
    %54 = vector.extract_strided_slice %0 {offsets = [0, 7], sizes = [4, 1], strides = [1, 1]} : vector<4x9xf32> to vector<4x1xf32>
    %55 = vector.broadcast %54 : vector<4x1xf32> to vector<4x128xf32>
    %56 = arith.mulf %53, %55 : vector<4x128xf32>
    %57 = arith.addf %51, %56 : vector<4x128xf32>
    %58 = vector.extract_strided_slice %4 {offsets = [0, 10], sizes = [4, 128], strides = [1, 1]} : vector<4x256xbf16> to vector<4x128xbf16>
    %59 = arith.extf %58 : vector<4x128xbf16> to vector<4x128xf32>
    %60 = vector.extract_strided_slice %0 {offsets = [0, 8], sizes = [4, 1], strides = [1, 1]} : vector<4x9xf32> to vector<4x1xf32>
    %61 = vector.broadcast %60 : vector<4x1xf32> to vector<4x128xf32>
    %62 = arith.mulf %59, %61 : vector<4x128xf32>
    %63 = arith.addf %57, %62 : vector<4x128xf32>
    %cst = arith.constant 0.000000e+00 : f32
    %64 = vector.broadcast %cst : f32 to vector<4x128xf32>
    %65 = arith.maximumf %63, %64 : vector<4x128xf32>
    %66 = vector.extract_strided_slice %1 {offsets = [0, 0], sizes = [8, 1], strides = [1, 1]} : vector<8x4xf32> to vector<8x1xf32>
    %67 = vector.extract_strided_slice %65 {offsets = [0, 0], sizes = [1, 128], strides = [1, 1]} : vector<4x128xf32> to vector<1x128xf32>
    %68 = vector.broadcast %66 : vector<8x1xf32> to vector<8x128xf32>
    %69 = vector.broadcast %67 : vector<1x128xf32> to vector<8x128xf32>
    %70 = arith.mulf %68, %69 : vector<8x128xf32>
    %71 = vector.extract_strided_slice %1 {offsets = [0, 1], sizes = [8, 1], strides = [1, 1]} : vector<8x4xf32> to vector<8x1xf32>
    %72 = vector.extract_strided_slice %65 {offsets = [1, 0], sizes = [1, 128], strides = [1, 1]} : vector<4x128xf32> to vector<1x128xf32>
    %73 = vector.broadcast %71 : vector<8x1xf32> to vector<8x128xf32>
    %74 = vector.broadcast %72 : vector<1x128xf32> to vector<8x128xf32>
    %75 = arith.mulf %73, %74 : vector<8x128xf32>
    %76 = arith.addf %70, %75 : vector<8x128xf32>
    %77 = vector.extract_strided_slice %1 {offsets = [0, 2], sizes = [8, 1], strides = [1, 1]} : vector<8x4xf32> to vector<8x1xf32>
    %78 = vector.extract_strided_slice %65 {offsets = [2, 0], sizes = [1, 128], strides = [1, 1]} : vector<4x128xf32> to vector<1x128xf32>
    %79 = vector.broadcast %77 : vector<8x1xf32> to vector<8x128xf32>
    %80 = vector.broadcast %78 : vector<1x128xf32> to vector<8x128xf32>
    %81 = arith.mulf %79, %80 : vector<8x128xf32>
    %82 = arith.addf %76, %81 : vector<8x128xf32>
    %83 = vector.extract_strided_slice %1 {offsets = [0, 3], sizes = [8, 1], strides = [1, 1]} : vector<8x4xf32> to vector<8x1xf32>
    %84 = vector.extract_strided_slice %65 {offsets = [3, 0], sizes = [1, 128], strides = [1, 1]} : vector<4x128xf32> to vector<1x128xf32>
    %85 = vector.broadcast %83 : vector<8x1xf32> to vector<8x128xf32>
    %86 = vector.broadcast %84 : vector<1x128xf32> to vector<8x128xf32>
    %87 = arith.mulf %85, %86 : vector<8x128xf32>
    %88 = arith.addf %82, %87 : vector<8x128xf32>
    %cst_14 = arith.constant 0.000000e+00 : f32
    %89 = vector.broadcast %cst_14 : f32 to vector<8x128xf32>
    %90 = arith.maximumf %88, %89 : vector<8x128xf32>
    %91 = arith.extf %34 : vector<4x128xbf16> to vector<4x128xf32>
    %92 = arith.extf %40 : vector<4x128xbf16> to vector<4x128xf32>
    %93 = arith.maximumf %91, %92 : vector<4x128xf32>
    %94 = arith.extf %52 : vector<4x128xbf16> to vector<4x128xf32>
    %95 = arith.maximumf %93, %94 : vector<4x128xf32>
    %96 = arith.extf %58 : vector<4x128xbf16> to vector<4x128xf32>
    %97 = arith.maximumf %95, %96 : vector<4x128xf32>
    %98 = vector.extract_strided_slice %2 {offsets = [0, 0], sizes = [8, 1], strides = [1, 1]} : vector<8x4xf32> to vector<8x1xf32>
    %99 = vector.extract_strided_slice %97 {offsets = [0, 0], sizes = [1, 128], strides = [1, 1]} : vector<4x128xf32> to vector<1x128xf32>
    %100 = vector.broadcast %98 : vector<8x1xf32> to vector<8x128xf32>
    %101 = vector.broadcast %99 : vector<1x128xf32> to vector<8x128xf32>
    %102 = arith.mulf %100, %101 : vector<8x128xf32>
    %103 = vector.extract_strided_slice %2 {offsets = [0, 1], sizes = [8, 1], strides = [1, 1]} : vector<8x4xf32> to vector<8x1xf32>
    %104 = vector.extract_strided_slice %97 {offsets = [1, 0], sizes = [1, 128], strides = [1, 1]} : vector<4x128xf32> to vector<1x128xf32>
    %105 = vector.broadcast %103 : vector<8x1xf32> to vector<8x128xf32>
    %106 = vector.broadcast %104 : vector<1x128xf32> to vector<8x128xf32>
    %107 = arith.mulf %105, %106 : vector<8x128xf32>
    %108 = arith.addf %102, %107 : vector<8x128xf32>
    %109 = vector.extract_strided_slice %2 {offsets = [0, 2], sizes = [8, 1], strides = [1, 1]} : vector<8x4xf32> to vector<8x1xf32>
    %110 = vector.extract_strided_slice %97 {offsets = [2, 0], sizes = [1, 128], strides = [1, 1]} : vector<4x128xf32> to vector<1x128xf32>
    %111 = vector.broadcast %109 : vector<8x1xf32> to vector<8x128xf32>
    %112 = vector.broadcast %110 : vector<1x128xf32> to vector<8x128xf32>
    %113 = arith.mulf %111, %112 : vector<8x128xf32>
    %114 = arith.addf %108, %113 : vector<8x128xf32>
    %115 = vector.extract_strided_slice %2 {offsets = [0, 3], sizes = [8, 1], strides = [1, 1]} : vector<8x4xf32> to vector<8x1xf32>
    %116 = vector.extract_strided_slice %97 {offsets = [3, 0], sizes = [1, 128], strides = [1, 1]} : vector<4x128xf32> to vector<1x128xf32>
    %117 = vector.broadcast %115 : vector<8x1xf32> to vector<8x128xf32>
    %118 = vector.broadcast %116 : vector<1x128xf32> to vector<8x128xf32>
    %119 = arith.mulf %117, %118 : vector<8x128xf32>
    %120 = arith.addf %114, %119 : vector<8x128xf32>
    %cst_15 = arith.constant 0.000000e+00 : f32
    %121 = vector.broadcast %cst_15 : f32 to vector<8x128xf32>
    %122 = arith.maximumf %120, %121 : vector<8x128xf32>
    %123 = arith.addf %90, %122 : vector<8x128xf32>
    %cst_16 = arith.constant 0.000000e+00 : f32
    %124 = vector.broadcast %cst_16 : f32 to vector<8x128xf32>
    %125 = arith.maximumf %123, %124 : vector<8x128xf32>
    %c0_17 = arith.constant 0 : index
    %c0_18 = arith.constant 0 : index
    %c0_19 = arith.constant 0 : index
    %126 = vector.load %arg5[%c0_17, %c0_18, %c0_19] : memref<2x8x128xf32, #tpu.memory_space<vmem>>, vector<1x8x128xf32>
    %127 = vector.shape_cast %126 : vector<1x8x128xf32> to vector<8x128xf32>
    %128 = vector.shape_cast %125 : vector<8x128xf32> to vector<1x8x128xf32>
    tpu.vector_store %arg5[%c0_17, %c0_18, %c0_19], %128 {strides = array<i32>} : memref<2x8x128xf32, #tpu.memory_space<vmem>>, vector<1x8x128xf32>,
    %c4 = arith.constant 4 : index
    %c0_20 = arith.constant 0 : index
    %c0_21 = arith.constant 0 : index
    %129 = vector.load %arg1[%c4, %c0_20, %c0_21] : memref<8x4x256xbf16, #tpu.memory_space<vmem>>, vector<1x4x256xbf16>
    %130 = vector.shape_cast %129 : vector<1x4x256xbf16> to vector<4x256xbf16>
    %c5 = arith.constant 5 : index
    %c0_22 = arith.constant 0 : index
    %c0_23 = arith.constant 0 : index
    %131 = vector.load %arg1[%c5, %c0_22, %c0_23] : memref<8x4x256xbf16, #tpu.memory_space<vmem>>, vector<1x4x256xbf16>
    %132 = vector.shape_cast %131 : vector<1x4x256xbf16> to vector<4x256xbf16>
    %c6 = arith.constant 6 : index
    %c0_24 = arith.constant 0 : index
    %c0_25 = arith.constant 0 : index
    %133 = vector.load %arg1[%c6, %c0_24, %c0_25] : memref<8x4x256xbf16, #tpu.memory_space<vmem>>, vector<1x4x256xbf16>
    %134 = vector.shape_cast %133 : vector<1x4x256xbf16> to vector<4x256xbf16>
    %c7 = arith.constant 7 : index
    %c0_26 = arith.constant 0 : index
    %c0_27 = arith.constant 0 : index
    %135 = vector.load %arg1[%c7, %c0_26, %c0_27] : memref<8x4x256xbf16, #tpu.memory_space<vmem>>, vector<1x4x256xbf16>
    %136 = vector.shape_cast %135 : vector<1x4x256xbf16> to vector<4x256xbf16>
    %137 = vector.extract_strided_slice %130 {offsets = [0, 0], sizes = [4, 128], strides = [1, 1]} : vector<4x256xbf16> to vector<4x128xbf16>
    %138 = arith.extf %137 : vector<4x128xbf16> to vector<4x128xf32>
    %139 = vector.extract_strided_slice %0 {offsets = [0, 0], sizes = [4, 1], strides = [1, 1]} : vector<4x9xf32> to vector<4x1xf32>
    %140 = vector.broadcast %139 : vector<4x1xf32> to vector<4x128xf32>
    %141 = arith.mulf %138, %140 : vector<4x128xf32>
    %142 = vector.extract_strided_slice %132 {offsets = [0, 0], sizes = [4, 128], strides = [1, 1]} : vector<4x256xbf16> to vector<4x128xbf16>
    %143 = arith.extf %142 : vector<4x128xbf16> to vector<4x128xf32>
    %144 = vector.extract_strided_slice %0 {offsets = [0, 1], sizes = [4, 1], strides = [1, 1]} : vector<4x9xf32> to vector<4x1xf32>
    %145 = vector.broadcast %144 : vector<4x1xf32> to vector<4x128xf32>
    %146 = arith.mulf %143, %145 : vector<4x128xf32>
    %147 = arith.addf %141, %146 : vector<4x128xf32>
    %148 = vector.extract_strided_slice %130 {offsets = [0, 1], sizes = [4, 128], strides = [1, 1]} : vector<4x256xbf16> to vector<4x128xbf16>
    %149 = arith.extf %148 : vector<4x128xbf16> to vector<4x128xf32>
    %150 = vector.extract_strided_slice %0 {offsets = [0, 2], sizes = [4, 1], strides = [1, 1]} : vector<4x9xf32> to vector<4x1xf32>
    %151 = vector.broadcast %150 : vector<4x1xf32> to vector<4x128xf32>
    %152 = arith.mulf %149, %151 : vector<4x128xf32>
    %153 = arith.addf %147, %152 : vector<4x128xf32>
    %154 = vector.extract_strided_slice %134 {offsets = [0, 0], sizes = [4, 128], strides = [1, 1]} : vector<4x256xbf16> to vector<4x128xbf16>
    %155 = arith.extf %154 : vector<4x128xbf16> to vector<4x128xf32>
    %156 = vector.extract_strided_slice %0 {offsets = [0, 3], sizes = [4, 1], strides = [1, 1]} : vector<4x9xf32> to vector<4x1xf32>
    %157 = vector.broadcast %156 : vector<4x1xf32> to vector<4x128xf32>
    %158 = arith.mulf %155, %157 : vector<4x128xf32>
    %159 = arith.addf %153, %158 : vector<4x128xf32>
    %160 = vector.extract_strided_slice %136 {offsets = [0, 0], sizes = [4, 128], strides = [1, 1]} : vector<4x256xbf16> to vector<4x128xbf16>
    %161 = arith.extf %160 : vector<4x128xbf16> to vector<4x128xf32>
    %162 = vector.extract_strided_slice %0 {offsets = [0, 4], sizes = [4, 1], strides = [1, 1]} : vector<4x9xf32> to vector<4x1xf32>
    %163 = vector.broadcast %162 : vector<4x1xf32> to vector<4x128xf32>
    %164 = arith.mulf %161, %163 : vector<4x128xf32>
    %165 = arith.addf %159, %164 : vector<4x128xf32>
    %166 = vector.extract_strided_slice %134 {offsets = [0, 1], sizes = [4, 128], strides = [1, 1]} : vector<4x256xbf16> to vector<4x128xbf16>
    %167 = arith.extf %166 : vector<4x128xbf16> to vector<4x128xf32>
    %168 = vector.extract_strided_slice %0 {offsets = [0, 5], sizes = [4, 1], strides = [1, 1]} : vector<4x9xf32> to vector<4x1xf32>
    %169 = vector.broadcast %168 : vector<4x1xf32> to vector<4x128xf32>
    %170 = arith.mulf %167, %169 : vector<4x128xf32>
    %171 = arith.addf %165, %170 : vector<4x128xf32>
    %172 = vector.extract_strided_slice %130 {offsets = [0, 9], sizes = [4, 128], strides = [1, 1]} : vector<4x256xbf16> to vector<4x128xbf16>
    %173 = arith.extf %172 : vector<4x128xbf16> to vector<4x128xf32>
    %174 = vector.extract_strided_slice %0 {offsets = [0, 6], sizes = [4, 1], strides = [1, 1]} : vector<4x9xf32> to vector<4x1xf32>
    %175 = vector.broadcast %174 : vector<4x1xf32> to vector<4x128xf32>
    %176 = arith.mulf %173, %175 : vector<4x128xf32>
    %177 = arith.addf %171, %176 : vector<4x128xf32>
    %178 = vector.extract_strided_slice %132 {offsets = [0, 9], sizes = [4, 128], strides = [1, 1]} : vector<4x256xbf16> to vector<4x128xbf16>
    %179 = arith.extf %178 : vector<4x128xbf16> to vector<4x128xf32>
    %180 = vector.extract_strided_slice %0 {offsets = [0, 7], sizes = [4, 1], strides = [1, 1]} : vector<4x9xf32> to vector<4x1xf32>
    %181 = vector.broadcast %180 : vector<4x1xf32> to vector<4x128xf32>
    %182 = arith.mulf %179, %181 : vector<4x128xf32>
    %183 = arith.addf %177, %182 : vector<4x128xf32>
    %184 = vector.extract_strided_slice %130 {offsets = [0, 10], sizes = [4, 128], strides = [1, 1]} : vector<4x256xbf16> to vector<4x128xbf16>
    %185 = arith.extf %184 : vector<4x128xbf16> to vector<4x128xf32>
    %186 = vector.extract_strided_slice %0 {offsets = [0, 8], sizes = [4, 1], strides = [1, 1]} : vector<4x9xf32> to vector<4x1xf32>
    %187 = vector.broadcast %186 : vector<4x1xf32> to vector<4x128xf32>
    %188 = arith.mulf %185, %187 : vector<4x128xf32>
    %189 = arith.addf %183, %188 : vector<4x128xf32>
    %cst_28 = arith.constant 0.000000e+00 : f32
    %190 = vector.broadcast %cst_28 : f32 to vector<4x128xf32>
    %191 = arith.maximumf %189, %190 : vector<4x128xf32>
    %192 = vector.extract_strided_slice %1 {offsets = [0, 0], sizes = [8, 1], strides = [1, 1]} : vector<8x4xf32> to vector<8x1xf32>
    %193 = vector.extract_strided_slice %191 {offsets = [0, 0], sizes = [1, 128], strides = [1, 1]} : vector<4x128xf32> to vector<1x128xf32>
    %194 = vector.broadcast %192 : vector<8x1xf32> to vector<8x128xf32>
    %195 = vector.broadcast %193 : vector<1x128xf32> to vector<8x128xf32>
    %196 = arith.mulf %194, %195 : vector<8x128xf32>
    %197 = vector.extract_strided_slice %1 {offsets = [0, 1], sizes = [8, 1], strides = [1, 1]} : vector<8x4xf32> to vector<8x1xf32>
    %198 = vector.extract_strided_slice %191 {offsets = [1, 0], sizes = [1, 128], strides = [1, 1]} : vector<4x128xf32> to vector<1x128xf32>
    %199 = vector.broadcast %197 : vector<8x1xf32> to vector<8x128xf32>
    %200 = vector.broadcast %198 : vector<1x128xf32> to vector<8x128xf32>
    %201 = arith.mulf %199, %200 : vector<8x128xf32>
    %202 = arith.addf %196, %201 : vector<8x128xf32>
    %203 = vector.extract_strided_slice %1 {offsets = [0, 2], sizes = [8, 1], strides = [1, 1]} : vector<8x4xf32> to vector<8x1xf32>
    %204 = vector.extract_strided_slice %191 {offsets = [2, 0], sizes = [1, 128], strides = [1, 1]} : vector<4x128xf32> to vector<1x128xf32>
    %205 = vector.broadcast %203 : vector<8x1xf32> to vector<8x128xf32>
    %206 = vector.broadcast %204 : vector<1x128xf32> to vector<8x128xf32>
    %207 = arith.mulf %205, %206 : vector<8x128xf32>
    %208 = arith.addf %202, %207 : vector<8x128xf32>
    %209 = vector.extract_strided_slice %1 {offsets = [0, 3], sizes = [8, 1], strides = [1, 1]} : vector<8x4xf32> to vector<8x1xf32>
    %210 = vector.extract_strided_slice %191 {offsets = [3, 0], sizes = [1, 128], strides = [1, 1]} : vector<4x128xf32> to vector<1x128xf32>
    %211 = vector.broadcast %209 : vector<8x1xf32> to vector<8x128xf32>
    %212 = vector.broadcast %210 : vector<1x128xf32> to vector<8x128xf32>
    %213 = arith.mulf %211, %212 : vector<8x128xf32>
    %214 = arith.addf %208, %213 : vector<8x128xf32>
    %cst_29 = arith.constant 0.000000e+00 : f32
    %215 = vector.broadcast %cst_29 : f32 to vector<8x128xf32>
    %216 = arith.maximumf %214, %215 : vector<8x128xf32>
    %217 = arith.extf %160 : vector<4x128xbf16> to vector<4x128xf32>
    %218 = arith.extf %166 : vector<4x128xbf16> to vector<4x128xf32>
    %219 = arith.maximumf %217, %218 : vector<4x128xf32>
    %220 = arith.extf %178 : vector<4x128xbf16> to vector<4x128xf32>
    %221 = arith.maximumf %219, %220 : vector<4x128xf32>
    %222 = arith.extf %184 : vector<4x128xbf16> to vector<4x128xf32>
    %223 = arith.maximumf %221, %222 : vector<4x128xf32>
    %224 = vector.extract_strided_slice %2 {offsets = [0, 0], sizes = [8, 1], strides = [1, 1]} : vector<8x4xf32> to vector<8x1xf32>
    %225 = vector.extract_strided_slice %223 {offsets = [0, 0], sizes = [1, 128], strides = [1, 1]} : vector<4x128xf32> to vector<1x128xf32>
    %226 = vector.broadcast %224 : vector<8x1xf32> to vector<8x128xf32>
    %227 = vector.broadcast %225 : vector<1x128xf32> to vector<8x128xf32>
    %228 = arith.mulf %226, %227 : vector<8x128xf32>
    %229 = vector.extract_strided_slice %2 {offsets = [0, 1], sizes = [8, 1], strides = [1, 1]} : vector<8x4xf32> to vector<8x1xf32>
    %230 = vector.extract_strided_slice %223 {offsets = [1, 0], sizes = [1, 128], strides = [1, 1]} : vector<4x128xf32> to vector<1x128xf32>
    %231 = vector.broadcast %229 : vector<8x1xf32> to vector<8x128xf32>
    %232 = vector.broadcast %230 : vector<1x128xf32> to vector<8x128xf32>
    %233 = arith.mulf %231, %232 : vector<8x128xf32>
    %234 = arith.addf %228, %233 : vector<8x128xf32>
    %235 = vector.extract_strided_slice %2 {offsets = [0, 2], sizes = [8, 1], strides = [1, 1]} : vector<8x4xf32> to vector<8x1xf32>
    %236 = vector.extract_strided_slice %223 {offsets = [2, 0], sizes = [1, 128], strides = [1, 1]} : vector<4x128xf32> to vector<1x128xf32>
    %237 = vector.broadcast %235 : vector<8x1xf32> to vector<8x128xf32>
    %238 = vector.broadcast %236 : vector<1x128xf32> to vector<8x128xf32>
    %239 = arith.mulf %237, %238 : vector<8x128xf32>
    %240 = arith.addf %234, %239 : vector<8x128xf32>
    %241 = vector.extract_strided_slice %2 {offsets = [0, 3], sizes = [8, 1], strides = [1, 1]} : vector<8x4xf32> to vector<8x1xf32>
    %242 = vector.extract_strided_slice %223 {offsets = [3, 0], sizes = [1, 128], strides = [1, 1]} : vector<4x128xf32> to vector<1x128xf32>
    %243 = vector.broadcast %241 : vector<8x1xf32> to vector<8x128xf32>
    %244 = vector.broadcast %242 : vector<1x128xf32> to vector<8x128xf32>
    %245 = arith.mulf %243, %244 : vector<8x128xf32>
    %246 = arith.addf %240, %245 : vector<8x128xf32>
    %cst_30 = arith.constant 0.000000e+00 : f32
    %247 = vector.broadcast %cst_30 : f32 to vector<8x128xf32>
    %248 = arith.maximumf %246, %247 : vector<8x128xf32>
    %249 = arith.addf %216, %248 : vector<8x128xf32>
    %cst_31 = arith.constant 0.000000e+00 : f32
    %250 = vector.broadcast %cst_31 : f32 to vector<8x128xf32>
    %251 = arith.maximumf %249, %250 : vector<8x128xf32>
    %c1_32 = arith.constant 1 : index
    %c0_33 = arith.constant 0 : index
    %c0_34 = arith.constant 0 : index
    %252 = vector.load %arg5[%c1_32, %c0_33, %c0_34] : memref<2x8x128xf32, #tpu.memory_space<vmem>>, vector<1x8x128xf32>
    %253 = vector.shape_cast %252 : vector<1x8x128xf32> to vector<8x128xf32>
    %254 = vector.shape_cast %251 : vector<8x128xf32> to vector<1x8x128xf32>
    tpu.vector_store %arg5[%c1_32, %c0_33, %c0_34], %254 {strides = array<i32>} : memref<2x8x128xf32, #tpu.memory_space<vmem>>, vector<1x8x128xf32>,
    return
  }
  func.func @transform_0(%arg0: i32) -> (i32, i32, i32) {
    %c0_i32 = arith.constant 0 : i32
    %c0_i32_0 = arith.constant 0 : i32
    %c0_i32_1 = arith.constant 0 : i32
    return %arg0, %c0_i32, %c0_i32_0 : i32, i32, i32
  }
  func.func @transform_1(%arg0: i32) -> (i32, i32) {
    %c0_i32 = arith.constant 0 : i32
    %c0_i32_0 = arith.constant 0 : i32
    %c0_i32_1 = arith.constant 0 : i32
    return %c0_i32, %c0_i32_0 : i32, i32
  }
  func.func @transform_2(%arg0: i32) -> (i32, i32) {
    %c0_i32 = arith.constant 0 : i32
    %c0_i32_0 = arith.constant 0 : i32
    %c0_i32_1 = arith.constant 0 : i32
    return %c0_i32, %c0_i32_0 : i32, i32
  }
  func.func @transform_3(%arg0: i32) -> (i32, i32) {
    %c0_i32 = arith.constant 0 : i32
    %c0_i32_0 = arith.constant 0 : i32
    %c0_i32_1 = arith.constant 0 : i32
    return %c0_i32, %c0_i32_0 : i32, i32
  }
  func.func @transform_4(%arg0: i32) -> (i32, i32, i32) {
    %c0_i32 = arith.constant 0 : i32
    %c0_i32_0 = arith.constant 0 : i32
    %c0_i32_1 = arith.constant 0 : i32
    return %arg0, %c0_i32, %c0_i32_0 : i32, i32, i32
  }
}

</mosaic_0001>

<llo_original>
// kernel: blaze_block_lite_pallas.1
$region0: #{blaze_block_lite_pallas.1}
  #allocation0 [shape = 'u32[]', space=smem, size = 0x4, offset = 0x4, fixed_abs, tag = 'smem constant byte address 0x4 - core index']
  #allocation1 [shape = 'u32[144,128]{1,0:T(1,128)}', space=vmem, size = 0x12000, scoped, tag = 'internal scratch']
  %s0 = inlined_call_operand.vmem [shape: bf16[8,4,256], index: 0, kind: input, shape index: {}]
  %s1 = inlined_call_operand.vmem [shape: f32[4,9], index: 1, kind: input, shape index: {}]
  %s2 = inlined_call_operand.vmem [shape: f32[8,4], index: 2, kind: input, shape index: {}]
  %s3 = inlined_call_operand.vmem [shape: f32[8,4], index: 3, kind: input, shape index: {}]
  %s4 = inlined_call_operand.vmem [shape: f32[2,8,128], index: 4, kind: output, shape index: {}]
  %s5 = sld [smem:[#allocation0]]
  $region26: #{blaze_block_lite_pallas.1} parent=0
    _
  %s7 = ssub.s32 1, %s5
  %s8 = scalar_select 0, %s7, %s5
  // Predicated region
  $region2: #{blaze_block_lite_pallas.1} parent=0 // pred_check
    _
  $region3: #{blaze_block_lite_pallas.1} parent=0 // pred_check_branch
    %10 = sbr.rel (0) target = $region5
  $region4: #{blaze_block_lite_pallas.1} parent=0 // pred_region
    _
  $region5: #{blaze_block_lite_pallas.1} parent=0 // pred_fallthru
    _
  // Predicated region
  $region6: #{blaze_block_lite_pallas.1} parent=0 // pred_check
    _
  $region7: #{blaze_block_lite_pallas.1} parent=0 // pred_check_branch
    %12 = sbr.rel (0) target = $region9
  $region8: #{blaze_block_lite_pallas.1} parent=0 // pred_region
    _
  $region9: #{blaze_block_lite_pallas.1} parent=0 // pred_fallthru
    _
  // Predicated region
  $region10: #{blaze_block_lite_pallas.1} parent=0 // pred_check
    _
  $region11: #{blaze_block_lite_pallas.1} parent=0 // pred_check_branch
    %14 = sbr.rel (0) target = $region13
  $region12: #{blaze_block_lite_pallas.1} parent=0 // pred_region
    _
  $region13: #{blaze_block_lite_pallas.1} parent=0 // pred_fallthru
    _
  // Predicated region
  $region14: #{blaze_block_lite_pallas.1} parent=0 // pred_check
    _
  $region15: #{blaze_block_lite_pallas.1} parent=0 // pred_check_branch
    %16 = sbr.rel (0) target = $region17
  $region16: #{blaze_block_lite_pallas.1} parent=0 // pred_region
    _
  $region17: #{blaze_block_lite_pallas.1} parent=0 // pred_fallthru
    _
  %v17 = vld [vmem:[%s1] sm:$0xf]
  %v18 = vld [vmem:[%s2] sm:$0xff]
  %v19 = vld [vmem:[%s3] sm:$0xff]
  %v20 = vld [vmem:[%s0] sm:$0xf]
  %s21 = scalar_lea.vmem %s0, 4
  %v22 = vld [vmem:[%s21] sm:$0xf]
  %s23 = scalar_lea.vmem %s0, 8
  %v24 = vld [vmem:[%s23] sm:$0xf]
  %s25 = scalar_lea.vmem %s0, 12
  %v26 = vld [vmem:[%s25] sm:$0xf]
  %v27 = vunpack.c.l.bf16 %v20
  %29 = vset.pattern.permute.xlu0 0
  %30 = vperm.xlu0 %29, %v17
  %v31 = vpop.permute.xlu0 %30
  %v33 = vmul.f32 %v27, %v31
  %v34 = vunpack.c.l.bf16 %v22
  %35 = vset.pattern.permute.xlu0 1
  %36 = vperm.xlu0 %35, %v17
  %v37 = vpop.permute.xlu0 %36
  %v39 = vmul.f32 %v34, %v37
  %v40 = vadd.f32 %v33, %v39
  %41 = vset.pattern.permute.xlu0 2
  %42 = vperm.xlu0 %41, %v17
  %v43 = vpop.permute.xlu0 %42
  %v45 = vmul.f32 %v27, %v43
  %47 = vrot.lane.b32.xlu0 %v45, 127
  %v48 = vpop.permute.xlu0 %47
  %v49 = vrot.slane %v48, 4
  %vm50 = vcmask 1039360
  %v51 = vsel %vm50, %v48, %v49
  %v53 = vadd.f32 %v40, %v51
  %v54 = vunpack.c.l.bf16 %v24
  %55 = vset.pattern.permute.xlu0 3
  %56 = vperm.xlu0 %55, %v17
  %v57 = vpop.permute.xlu0 %56
  %v59 = vmul.f32 %v54, %v57
  %v60 = vadd.f32 %v53, %v59
  %v61 = vunpack.c.l.bf16 %v26
  %62 = vset.pattern.permute.xlu0 4
  %63 = vperm.xlu0 %62, %v17
  %v64 = vpop.permute.xlu0 %63
  %v66 = vmul.f32 %v61, %v64
  %v67 = vadd.f32 %v60, %v66
  %68 = vset.pattern.permute.xlu0 5
  %69 = vperm.xlu0 %68, %v17
  %v70 = vpop.permute.xlu0 %69
  %v72 = vmul.f32 %v54, %v70
  %74 = vrot.lane.b32.xlu0 %v72, 127
  %v75 = vpop.permute.xlu0 %74
  %v76 = vrot.slane %v75, 4
  %v77 = vsel %vm50, %v75, %v76
  %v79 = vadd.f32 %v67, %v77
  %80 = vset.pattern.permute.xlu0 6
  %81 = vperm.xlu0 %80, %v17
  %v82 = vpop.permute.xlu0 %81
  %v84 = vmul.f32 %v27, %v82
  %86 = vrot.lane.b32.xlu0 %v84, 119
  %v87 = vpop.permute.xlu0 %86
  %v88 = vrot.slane %v87, 4
  %vm89 = vcmask 973824
  %v90 = vsel %vm89, %v87, %v88
  %v92 = vadd.f32 %v79, %v90
  %93 = vset.pattern.permute.xlu0 7
  %94 = vperm.xlu0 %93, %v17
  %v95 = vpop.permute.xlu0 %94
  %v97 = vmul.f32 %v34, %v95
  %99 = vrot.lane.b32.xlu0 %v97, 119
  %v100 = vpop.permute.xlu0 %99
  %v101 = vrot.slane %v100, 4
  %v102 = vsel %vm89, %v100, %v101
  %v104 = vadd.f32 %v92, %v102
  %105 = vset.pattern.permute.xlu0 8
  %106 = vperm.xlu0 %105, %v17
  %v107 = vpop.permute.xlu0 %106
  %v109 = vmul.f32 %v27, %v107
  %111 = vrot.lane.b32.xlu0 %v109, 118
  %v112 = vpop.permute.xlu0 %111
  %v113 = vrot.slane %v112, 4
  %vm114 = vcmask 965632
  %v115 = vsel %vm114, %v112, %v113
  %v117 = vadd.f32 %v104, %v115
  %v118 = vmax.f32 %v117, 0.0
  %120 = vset.pattern.permute.xlu0 0
  %121 = vperm.xlu0 %120, %v18
  %v122 = vpop.permute.xlu0 %121
  %v124 = vlaneseq
  %v125 = vshrl.u32 %v124, 7
  %v126 = vsub.s32 0, %v125
  %v127 = vrot.slane %v118, %v126
  %v128 = vmul.f32 %v122, %v127
  %129 = vset.pattern.permute.xlu0 1
  %130 = vperm.xlu0 %129, %v18
  %v131 = vpop.permute.xlu0 %130
  %v133 = vlaneseq
  %v134 = vshrl.u32 %v133, 7
  %v135 = vsub.s32 1, %v134
  %v136 = vrot.slane %v118, %v135
  %v137 = vmul.f32 %v131, %v136
  %v138 = vadd.f32 %v128, %v137
  %139 = vset.pattern.permute.xlu0 2
  %140 = vperm.xlu0 %139, %v18
  %v141 = vpop.permute.xlu0 %140
  %v143 = vlaneseq
  %v144 = vshrl.u32 %v143, 7
  %v145 = vsub.s32 2, %v144
  %v146 = vrot.slane %v118, %v145
  %v147 = vmul.f32 %v141, %v146
  %v148 = vadd.f32 %v138, %v147
  %149 = vset.pattern.permute.xlu0 3
  %150 = vperm.xlu0 %149, %v18
  %v151 = vpop.permute.xlu0 %150
  %v153 = vlaneseq
  %v154 = vshrl.u32 %v153, 7
  %v155 = vsub.s32 3, %v154
  %v156 = vrot.slane %v118, %v155
  %v157 = vmul.f32 %v151, %v156
  %v158 = vadd.f32 %v148, %v157
  %v159 = vmax.f32 %v158, 0.0
  %161 = vrot.lane.b32.xlu0 %v54, 127
  %v162 = vpop.permute.xlu0 %161
  %v163 = vrot.slane %v162, 4
  %v164 = vsel %vm50, %v162, %v163
  %v166 = vmax.f32 %v61, %v164
  %168 = vrot.lane.b32.xlu0 %v34, 119
  %v169 = vpop.permute.xlu0 %168
  %v170 = vrot.slane %v169, 4
  %v171 = vsel %vm89, %v169, %v170
  %v173 = vmax.f32 %v166, %v171
  %175 = vrot.lane.b32.xlu0 %v27, 118
  %v176 = vpop.permute.xlu0 %175
  %v177 = vrot.slane %v176, 4
  %v178 = vsel %vm114, %v176, %v177
  %v180 = vmax.f32 %v173, %v178
  %182 = vset.pattern.permute.xlu0 0
  %183 = vperm.xlu0 %182, %v19
  %v184 = vpop.permute.xlu0 %183
  %v186 = vlaneseq
  %v187 = vshrl.u32 %v186, 7
  %v188 = vsub.s32 0, %v187
  %v189 = vrot.slane %v180, %v188
  %v190 = vmul.f32 %v184, %v189
  %191 = vset.pattern.permute.xlu0 1
  %192 = vperm.xlu0 %191, %v19
  %v193 = vpop.permute.xlu0 %192
  %v195 = vlaneseq
  %v196 = vshrl.u32 %v195, 7
  %v197 = vsub.s32 1, %v196
  %v198 = vrot.slane %v180, %v197
  %v199 = vmul.f32 %v193, %v198
  %v200 = vadd.f32 %v190, %v199
  %201 = vset.pattern.permute.xlu0 2
  %202 = vperm.xlu0 %201, %v19
  %v203 = vpop.permute.xlu0 %202
  %v205 = vlaneseq
  %v206 = vshrl.u32 %v205, 7
  %v207 = vsub.s32 2, %v206
  %v208 = vrot.slane %v180, %v207
  %v209 = vmul.f32 %v203, %v208
  %v210 = vadd.f32 %v200, %v209
  %211 = vset.pattern.permute.xlu0 3
  %212 = vperm.xlu0 %211, %v19
  %v213 = vpop.permute.xlu0 %212
  %v215 = vlaneseq
  %v216 = vshrl.u32 %v215, 7
  %v217 = vsub.s32 3, %v216
  %v218 = vrot.slane %v180, %v217
  %v219 = vmul.f32 %v213, %v218
  %v220 = vadd.f32 %v210, %v219
  %v221 = vmax.f32 %v220, 0.0
  %v222 = vadd.f32 %v159, %v221
  %v223 = vmax.f32 %v222, 0.0
  %224 = vst [vmem:[%s4] sm:$0xff] %v223
  %s225 = scalar_lea.vmem %s0, 16
  %v226 = vld [vmem:[%s225] sm:$0xf]
  %s227 = scalar_lea.vmem %s0, 20
  %v228 = vld [vmem:[%s227] sm:$0xf]
  %s229 = scalar_lea.vmem %s0, 24
  %v230 = vld [vmem:[%s229] sm:$0xf]
  %s231 = scalar_lea.vmem %s0, 28
  %v232 = vld [vmem:[%s231] sm:$0xf]
  %v233 = vunpack.c.l.bf16 %v226
  %v234 = vmul.f32 %v233, %v31
  %v235 = vunpack.c.l.bf16 %v228
  %v236 = vmul.f32 %v235, %v37
  %v237 = vadd.f32 %v234, %v236
  %v238 = vmul.f32 %v233, %v43
  %240 = vrot.lane.b32.xlu0 %v238, 127
  %v241 = vpop.permute.xlu0 %240
  %v242 = vrot.slane %v241, 4
  %v243 = vsel %vm50, %v241, %v242
  %v245 = vadd.f32 %v237, %v243
  %v246 = vunpack.c.l.bf16 %v230
  %v247 = vmul.f32 %v246, %v57
  %v248 = vadd.f32 %v245, %v247
  %v249 = vunpack.c.l.bf16 %v232
  %v250 = vmul.f32 %v249, %v64
  %v251 = vadd.f32 %v248, %v250
  %v252 = vmul.f32 %v246, %v70
  %254 = vrot.lane.b32.xlu0 %v252, 127
  %v255 = vpop.permute.xlu0 %254
  %v256 = vrot.slane %v255, 4
  %v257 = vsel %vm50, %v255, %v256
  %v259 = vadd.f32 %v251, %v257
  %v260 = vmul.f32 %v233, %v82
  %262 = vrot.lane.b32.xlu0 %v260, 119
  %v263 = vpop.permute.xlu0 %262
  %v264 = vrot.slane %v263, 4
  %v265 = vsel %vm89, %v263, %v264
  %v267 = vadd.f32 %v259, %v265
  %v268 = vmul.f32 %v235, %v95
  %270 = vrot.lane.b32.xlu0 %v268, 119
  %v271 = vpop.permute.xlu0 %270
  %v272 = vrot.slane %v271, 4
  %v273 = vsel %vm89, %v271, %v272
  %v275 = vadd.f32 %v267, %v273
  %v276 = vmul.f32 %v233, %v107
  %278 = vrot.lane.b32.xlu0 %v276, 118
  %v279 = vpop.permute.xlu0 %278
  %v280 = vrot.slane %v279, 4
  %v281 = vsel %vm114, %v279, %v280
  %v283 = vadd.f32 %v275, %v281
  %v284 = vmax.f32 %v283, 0.0
  %v285 = vlaneseq
  %v286 = vshrl.u32 %v285, 7
  %v287 = vsub.s32 0, %v286
  %v288 = vrot.slane %v284, %v287
  %v289 = vmul.f32 %v122, %v288
  %v290 = vlaneseq
  %v291 = vshrl.u32 %v290, 7
  %v292 = vsub.s32 1, %v291
  %v293 = vrot.slane %v284, %v292
  %v294 = vmul.f32 %v131, %v293
  %v295 = vadd.f32 %v289, %v294
  %v296 = vlaneseq
  %v297 = vshrl.u32 %v296, 7
  %v298 = vsub.s32 2, %v297
  %v299 = vrot.slane %v284, %v298
  %v300 = vmul.f32 %v141, %v299
  %v301 = vadd.f32 %v295, %v300
  %v302 = vlaneseq
  %v303 = vshrl.u32 %v302, 7
  %v304 = vsub.s32 3, %v303
  %v305 = vrot.slane %v284, %v304
  %v306 = vmul.f32 %v151, %v305
  %v307 = vadd.f32 %v301, %v306
  %v308 = vmax.f32 %v307, 0.0
  %310 = vrot.lane.b32.xlu0 %v246, 127
  %v311 = vpop.permute.xlu0 %310
  %v312 = vrot.slane %v311, 4
  %v313 = vsel %vm50, %v311, %v312
  %v315 = vmax.f32 %v249, %v313
  %317 = vrot.lane.b32.xlu0 %v235, 119
  %v318 = vpop.permute.xlu0 %317
  %v319 = vrot.slane %v318, 4
  %v320 = vsel %vm89, %v318, %v319
  %v322 = vmax.f32 %v315, %v320
  %324 = vrot.lane.b32.xlu0 %v233, 118
  %v325 = vpop.permute.xlu0 %324
  %v326 = vrot.slane %v325, 4
  %v327 = vsel %vm114, %v325, %v326
  %v329 = vmax.f32 %v322, %v327
  %v330 = vlaneseq
  %v331 = vshrl.u32 %v330, 7
  %v332 = vsub.s32 0, %v331
  %v333 = vrot.slane %v329, %v332
  %v334 = vmul.f32 %v184, %v333
  %v335 = vlaneseq
  %v336 = vshrl.u32 %v335, 7
  %v337 = vsub.s32 1, %v336
  %v338 = vrot.slane %v329, %v337
  %v339 = vmul.f32 %v193, %v338
  %v340 = vadd.f32 %v334, %v339
  %v341 = vlaneseq
  %v342 = vshrl.u32 %v341, 7
  %v343 = vsub.s32 2, %v342
  %v344 = vrot.slane %v329, %v343
  %v345 = vmul.f32 %v203, %v344
  %v346 = vadd.f32 %v340, %v345
  %v347 = vlaneseq
  %v348 = vshrl.u32 %v347, 7
  %v349 = vsub.s32 3, %v348
  %v350 = vrot.slane %v329, %v349
  %v351 = vmul.f32 %v213, %v350
  %v352 = vadd.f32 %v346, %v351
  %v353 = vmax.f32 %v352, 0.0
  %v354 = vadd.f32 %v308, %v353
  %v355 = vmax.f32 %v354, 0.0
  %s356 = scalar_lea.vmem %s4, 8
  %357 = vst [vmem:[%s356] sm:$0xff] %v355
  // Predicated region
  $region18: #{blaze_block_lite_pallas.1} parent=0 // pred_check
    _
  $region19: #{blaze_block_lite_pallas.1} parent=0 // pred_check_branch
    %359 = sbr.rel (0) target = $region21
  $region20: #{blaze_block_lite_pallas.1} parent=0 // pred_region
    _
  $region21: #{blaze_block_lite_pallas.1} parent=0 // pred_fallthru
    _
  // Predicated region
  $region22: #{blaze_block_lite_pallas.1} parent=0 // pred_check
    _
  $region23: #{blaze_block_lite_pallas.1} parent=0 // pred_check_branch
    %361 = sbr.rel (0) target = $region25
  $region24: #{blaze_block_lite_pallas.1} parent=0 // pred_region
    _
  $region25: #{blaze_block_lite_pallas.1} parent=0 // pred_fallthru
    _

</llo_original>
